<compile_context>
chip_gen: v7x
topology: tpu7x:2x2x1
jax: 0.10.0
libtpu: 0.0.40
codegen_flags: <defaults>
</compile_context>

<pallas_src>
import functools
import math

import jax
import jax.numpy as jnp
from jax.experimental import pallas as pl
from jax.experimental.pallas import tpu as pltpu


_GELU_C = math.sqrt(2.0 / math.pi)


def _gelu_tanh(x):
    # GPT2 / TVAE gelu (tanh approximation), computed in f32.
    return 0.5 * x * (1.0 + jnp.tanh(_GELU_C * (x + 0.044715 * x * x * x)))


def _avg_self_attn_kernel(x_ref, w_ref, *rest, has_mask):
    if has_mask:
        mask_ref, rep_ref, scores_ref = rest
    else:
        mask_ref = None
        rep_ref, scores_ref = rest

    xf = x_ref[...].astype(jnp.float32)                 # (tb, S, H)
    wf = w_ref[...].astype(jnp.float32)                 # (1, H)

    # qk = gelu(<x, w>_H): VPU multiply + lane-axis reduce (XLU). f32.
    qk = jnp.sum(xf * wf, axis=-1)                      # (tb, S), lane-dense
    qk = _gelu_tanh(qk)
    if has_mask:
        qk = qk + mask_ref[...]                         # mask is f32

    # Exact, numerically stable softmax over the sequence axis.
    m = jnp.max(qk, axis=-1, keepdims=True)
    e = jnp.exp(qk - m)
    scores = e / jnp.sum(e, axis=-1, keepdims=True)     # (tb, S) f32

    # rep = sum_S scores * x : broadcast-multiply + sublane reduce, all in f32
    # (no bf16 quantization of the softmax weights, no M=1 MXU passes).
    rep = jnp.sum(scores[:, :, None] * xf, axis=1)      # (tb, H) f32

    rep_ref[...] = rep.astype(rep_ref.dtype)
    scores_ref[...] = scores.astype(scores_ref.dtype)


def _vmem_limit_bytes():
    """Generation-aware scoped-VMEM limit (~70% of physical, capped at 96 MiB)."""
    try:
        cap = int(pltpu.get_tpu_info().vmem_capacity_bytes)
    except Exception:
        cap = 128 * 1024 * 1024
    return min(int(0.70 * cap), 96 * 1024 * 1024)


def _choose_block_b(B, S, H, dtype_bytes, has_mask, vmem_limit):
    """Largest legal batch tile fitting ~65% of the VMEM limit.

    Legal tiles are multiples of 8 (sublane-dense 2-D output blocks) that
    divide B, or the full batch.  Prefer tiles that leave >= 2 grid steps so
    both v7x TensorCores get work.
    """
    budget = int(0.65 * vmem_limit)

    def block_bytes(tb):
        x_bytes = 2 * tb * S * H * dtype_bytes            # double-buffered input
        out_bytes = 2 * tb * (H + S) * dtype_bytes         # double-buffered outputs
        mask_bytes = 2 * tb * S * 4 if has_mask else 0     # f32 mask
        scratch = 2 * tb * S * H * 4                       # f32 intermediates
        return x_bytes + out_bytes + mask_bytes + scratch

    cands = sorted({d for d in range(8, B + 1, 8) if B % d == 0} | {B})
    fitting = [d for d in cands if block_bytes(d) <= budget]
    if not fitting:
        # A single batch element does not fit the budget; fall back to the
        # smallest legal block and rely on the raised vmem limit.
        # TODO(synk): add an S/H-tiled (online-softmax) path for (S, H) blocks
        # that exceed v7x's 64 MiB VMEM.
        fitting = [cands[0]]
    multi = [d for d in fitting if B // d >= 2]
    return max(multi) if multi else max(fitting)


def average_self_attention(inputs, attention_weights, attention_mask=None,
                           *, block_b=None):
    """Returns (representations (B, H), scores (B, S))."""
    B, S, H = inputs.shape
    dtype_bytes = jnp.dtype(inputs.dtype).itemsize
    has_mask = attention_mask is not None

    vmem_limit = _vmem_limit_bytes()
    if block_b is None:
        block_b = _choose_block_b(B, S, H, dtype_bytes, has_mask, vmem_limit)
    tb = block_b
    assert B % tb == 0, "block_b must divide the batch"
    grid = (B // tb,)

    # Weight as a (1, H) row so the kernel stays fully 2-D/3-D with H on lanes.
    w2 = attention_weights.reshape(1, H)

    in_specs = [
        pl.BlockSpec((tb, S, H), lambda b: (b, 0, 0)),   # x: tiled over batch
        pl.BlockSpec((1, H), lambda b: (0, 0)),          # w: resident
    ]
    args = [inputs, w2]
    if has_mask:
        # Keep the additive mask in f32 (matches the f32 in-kernel add).
        in_specs.append(pl.BlockSpec((tb, S), lambda b: (b, 0)))
        args.append(attention_mask.astype(jnp.float32))

    out_specs = (
        pl.BlockSpec((tb, H), lambda b: (b, 0)),         # representations
        pl.BlockSpec((tb, S), lambda b: (b, 0)),         # softmax scores
    )
    out_shape = (
        jax.ShapeDtypeStruct((B, H), inputs.dtype),
        jax.ShapeDtypeStruct((B, S), inputs.dtype),
    )

    rep, scores = pl.pallas_call(
        functools.partial(_avg_self_attn_kernel, has_mask=has_mask),
        grid=grid,
        in_specs=in_specs,
        out_specs=out_specs,
        out_shape=out_shape,
        compiler_params=pltpu.CompilerParams(
            dimension_semantics=("parallel",),   # batch shards across TCs (v7x)
            vmem_limit_bytes=vmem_limit,
        ),
    )(*args)

    return rep, scores


def reference(inputs, attention_weights, attention_mask=None):
    x = inputs.astype(jnp.float32)
    w = attention_weights.astype(jnp.float32)
    qk = _gelu_tanh(jnp.einsum('bsh,h->bs', x, w))
    if attention_mask is not None:
        qk = qk + attention_mask.astype(jnp.float32)
    scores = jax.nn.softmax(qk, axis=-1)
    rep = jnp.einsum('bs,bsh->bh', scores, x)
    return rep.astype(inputs.dtype), scores.astype(inputs.dtype)


if __name__ == "__main__":
    B, S, H = 2, 8, 32  # attention_size == hidden == H
    key = jax.random.PRNGKey(0)
    k_x, k_w, k_m = jax.random.split(key, 3)

    x = jax.random.normal(k_x, (B, S, H), dtype=jnp.float32)
    attn_w = 0.02 * jax.random.normal(k_w, (H,), dtype=jnp.float32)
    # Additive attention mask (0 = keep, large negative = drop).
    mask = jnp.where(jax.random.uniform(k_m, (B, S)) > 0.25,
                     0.0, -1e4).astype(jnp.float32)

    # Unmasked path (mask arg dropped entirely at trace time).
    rep, scores = average_self_attention(x, attn_w, None)
    # Masked path.
    rep_m, scores_m = average_self_attention(x, attn_w, mask)
    jax.block_until_ready((rep, scores, rep_m, scores_m))

    ref_rep, ref_scores = reference(x, attn_w, None)
    ref_rep_m, ref_scores_m = reference(x, attn_w, mask)

    assert jnp.allclose(rep, ref_rep, atol=1e-4, rtol=1e-4)
    assert jnp.allclose(scores, ref_scores, atol=1e-4, rtol=1e-4)
    assert jnp.allclose(rep_m, ref_rep_m, atol=1e-4, rtol=1e-4)
    assert jnp.allclose(scores_m, ref_scores_m, atol=1e-4, rtol=1e-4)

    print("KERNEL_OK")
</pallas_src>

<mosaic_0001>
module attributes {stable_mosaic.version = 11 : i64} {
  func.func @_avg_self_attn_kernel(%arg0: i32, %arg1: memref<2x8x32xf32, #tpu.memory_space<vmem>>, %arg2: memref<1x32xf32, #tpu.memory_space<vmem>>, %arg3: memref<2x32xf32, #tpu.memory_space<vmem>>, %arg4: memref<2x8xf32, #tpu.memory_space<vmem>>) attributes {dimension_semantics = [#tpu.dimension_semantics<parallel>], iteration_bounds = array<i64: 1>, scalar_prefetch = 0 : i64, scratch_operands = 0 : i64, tpu.core_type = #tpu.core_type<tc>, window_params = [{transform_indices = @transform_0, window_bounds = array<i64: 2, 8, 32>}, {pipeline_mode = #tpu.pipeline_mode<synchronous>, transform_indices = @transform_1, window_bounds = array<i64: 1, 32>}, {transform_indices = @transform_2, window_bounds = array<i64: 2, 32>}, {transform_indices = @transform_3, window_bounds = array<i64: 2, 8>}]} {
    %c0 = arith.constant 0 : index
    %c0_0 = arith.constant 0 : index
    %c0_1 = arith.constant 0 : index
    %0 = vector.load %arg1[%c0, %c0_0, %c0_1] : memref<2x8x32xf32, #tpu.memory_space<vmem>>, vector<2x8x32xf32>
    %c0_2 = arith.constant 0 : index
    %c0_3 = arith.constant 0 : index
    %1 = vector.load %arg2[%c0_2, %c0_3] : memref<1x32xf32, #tpu.memory_space<vmem>>, vector<1x32xf32>
    %2 = vector.shape_cast %1 : vector<1x32xf32> to vector<1x1x32xf32>
    %3 = vector.broadcast %2 : vector<1x1x32xf32> to vector<2x8x32xf32>
    %4 = arith.mulf %0, %3 : vector<2x8x32xf32>
    %cst = arith.constant dense<0.000000e+00> : vector<2x8xf32>
    %5 = vector.multi_reduction <add>, %4, %cst [2] : vector<2x8x32xf32> to vector<2x8xf32>
    %cst_4 = arith.constant 5.000000e-01 : f32
    %6 = vector.broadcast %cst_4 : f32 to vector<2x8xf32>
    %7 = arith.mulf %6, %5 : vector<2x8xf32>
    %cst_5 = arith.constant 4.471500e-02 : f32
    %8 = vector.broadcast %cst_5 : f32 to vector<2x8xf32>
    %9 = arith.mulf %8, %5 : vector<2x8xf32>
    %10 = arith.mulf %9, %5 : vector<2x8xf32>
    %11 = arith.mulf %10, %5 : vector<2x8xf32>
    %12 = arith.addf %5, %11 : vector<2x8xf32>
    %cst_6 = arith.constant 0.797884583 : f32
    %13 = vector.broadcast %cst_6 : f32 to vector<2x8xf32>
    %14 = arith.mulf %13, %12 : vector<2x8xf32>
    %15 = math.tanh %14 : vector<2x8xf32>
    %cst_7 = arith.constant 1.000000e+00 : f32
    %16 = vector.broadcast %cst_7 : f32 to vector<2x8xf32>
    %17 = arith.addf %16, %15 : vector<2x8xf32>
    %18 = arith.mulf %7, %17 : vector<2x8xf32>
    %cst_8 = arith.constant dense<0xFF800000> : vector<2xf32>
    %19 = vector.multi_reduction <maximumf>, %18, %cst_8 [1] : vector<2x8xf32> to vector<2xf32>
    %20 = vector.shape_cast %19 : vector<2xf32> to vector<2x1xf32>
    %21 = vector.broadcast %20 : vector<2x1xf32> to vector<2x8xf32>
    %22 = arith.subf %18, %21 : vector<2x8xf32>
    %23 = math.exp %22 : vector<2x8xf32>
    %cst_9 = arith.constant dense<0.000000e+00> : vector<2xf32>
    %24 = vector.multi_reduction <add>, %23, %cst_9 [1] : vector<2x8xf32> to vector<2xf32>
    %25 = vector.shape_cast %24 : vector<2xf32> to vector<2x1xf32>
    %26 = vector.broadcast %25 : vector<2x1xf32> to vector<2x8xf32>
    %27 = arith.divf %23, %26 : vector<2x8xf32>
    %28 = vector.shape_cast %27 : vector<2x8xf32> to vector<2x8x1xf32>
    %29 = vector.broadcast %28 : vector<2x8x1xf32> to vector<2x8x32xf32>
    %30 = arith.mulf %29, %0 : vector<2x8x32xf32>
    %cst_10 = arith.constant dense<0.000000e+00> : vector<2x32xf32>
    %31 = vector.multi_reduction <add>, %30, %cst_10 [1] : vector<2x8x32xf32> to vector<2x32xf32>
    %c0_11 = arith.constant 0 : index
    %c0_12 = arith.constant 0 : index
    %32 = vector.load %arg3[%c0_11, %c0_12] : memref<2x32xf32, #tpu.memory_space<vmem>>, vector<2x32xf32>
    tpu.vector_store %arg3[%c0_11, %c0_12], %31 {strides = array<i32>} : memref<2x32xf32, #tpu.memory_space<vmem>>, vector<2x32xf32>,
    %c0_13 = arith.constant 0 : index
    %c0_14 = arith.constant 0 : index
    %33 = vector.load %arg4[%c0_13, %c0_14] : memref<2x8xf32, #tpu.memory_space<vmem>>, vector<2x8xf32>
    tpu.vector_store %arg4[%c0_13, %c0_14], %27 {strides = array<i32>} : memref<2x8xf32, #tpu.memory_space<vmem>>, vector<2x8xf32>,
    return
  }
  func.func @transform_0(%arg0: i32) -> (i32, i32, i32) {
    %c0_i32 = arith.constant 0 : i32
    %c0_i32_0 = arith.constant 0 : i32
    %c0_i32_1 = arith.constant 0 : i32
    return %arg0, %c0_i32, %c0_i32_0 : i32, i32, i32
  }
  func.func @transform_1(%arg0: i32) -> (i32, i32) {
    %c0_i32 = arith.constant 0 : i32
    %c0_i32_0 = arith.constant 0 : i32
    %c0_i32_1 = arith.constant 0 : i32
    return %c0_i32, %c0_i32_0 : i32, i32
  }
  func.func @transform_2(%arg0: i32) -> (i32, i32) {
    %c0_i32 = arith.constant 0 : i32
    %c0_i32_0 = arith.constant 0 : i32
    return %arg0, %c0_i32 : i32, i32
  }
  func.func @transform_3(%arg0: i32) -> (i32, i32) {
    %c0_i32 = arith.constant 0 : i32
    %c0_i32_0 = arith.constant 0 : i32
    return %arg0, %c0_i32 : i32, i32
  }
}

</mosaic_0001>

<llo_original>
// kernel: tpu_custom_call.1
$region0: #{tpu_custom_call.1}
  #allocation0 [shape = 'u32[]', space=smem, size = 0x4, offset = 0x4, fixed_abs, tag = 'smem constant byte address 0x4 - core index']
  #allocation1 [shape = 'u32[144,128]{1,0:T(1,128)}', space=vmem, size = 0x12000, scoped, tag = 'internal scratch']
  %s0 = inlined_call_operand.hbm [shape: f32[2,8,32], index: 0, kind: input, shape index: {}]
  %s1 = inlined_call_operand.hbm [shape: f32[1,32], index: 1, kind: input, shape index: {}]
  %s2 = inlined_call_operand.hbm [shape: f32[2,32], index: 2, kind: output, shape index: {0}]
  %s3 = inlined_call_operand.hbm [shape: f32[2,8], index: 3, kind: output, shape index: {1}]
  %4 = xla_tuple %s2, %s3
  %s5 = sld [smem:[#allocation0]]
  $region34: #{tpu_custom_call.1} parent=0
    _
  %s7 = ssub.s32 1, %s5
  %s8 = scalar_select 0, %s7, %s5
  $region1: #{tpu_custom_call.1} parent=0
    #allocation2 [shape = 'u8[8192]{0}', space=vmem, size = 0x2000, scoped, tag = 'input window, operand 0, single buffered']
    #allocation3 [shape = 's32[1]{0}', space=sflag, size = 0x4, scoped, tag = 'scoped memory for tpu_custom_call.1']
    #allocation4 [shape = 's32[1]{0}', space=sflag, size = 0x4, scoped, tag = 'scoped memory for tpu_custom_call.1']
    #allocation5 [shape = 'u8[512]{0}', space=vmem, size = 0x400, scoped, tag = 'input window, operand 1, single buffered']
    #allocation6 [shape = 's32[1]{0}', space=sflag, size = 0x4, scoped, tag = 'scoped memory for tpu_custom_call.1']
    #allocation7 [shape = 'u8[1024]{0}', space=vmem, size = 0x400, scoped, tag = 'output window, operand 0, single buffered']
    #allocation8 [shape = 'u8[1024]{0}', space=vmem, size = 0x400, scoped, tag = 'output window, operand 1, single buffered']
    #allocation9 [shape = 's32[1]{0}', space=sflag, size = 0x4, scoped, tag = 'scoped memory for tpu_custom_call.1']
    %9 = vsyncpa [#allocation3], 0
    %10 = vsyncpa [#allocation6], 0
    %11 = vsyncpa [#allocation4], 0
    %12 = vsyncpa [#allocation9], 0
    // Predicated region
    $region2: #{tpu_custom_call.1} parent=1 // pred_check
      _
    $region3: #{tpu_custom_call.1} parent=1 // pred_check_branch
      %14 = sbr.rel (0) target = $region5
    $region4: #{tpu_custom_call.1} parent=1 // pred_region
      %s16 = ssub.s32 256, 256
      %17 = vsyncadd [#allocation3], %s16
      %s18 = sshll.u32 [#allocation2], 4
      %s19 = int_to_ptr.vmem [resolvable:$true] %s18
      %24 = dma.hbm_to_vmem [thread:$0]  %s0, 256, %s19, [#allocation3], 128, 128, 8
    $region5: #{tpu_custom_call.1} parent=1 // pred_fallthru
      _
    // Predicated region
    $region6: #{tpu_custom_call.1} parent=1 // pred_check
      _
    $region7: #{tpu_custom_call.1} parent=1 // pred_check_branch
      %26 = sbr.rel (0) target = $region9
    $region8: #{tpu_custom_call.1} parent=1 // pred_region
      %s28 = ssub.s32 16, 16
      %29 = vsyncadd [#allocation6], %s28
      %s31 = sshll.u32 [#allocation5], 4
      %s32 = int_to_ptr.vmem [resolvable:$true] %s31
      %34 = dma.hbm_to_vmem [thread:$0]  %s1, 16, %s32, [#allocation6]
    $region9: #{tpu_custom_call.1} parent=1 // pred_fallthru
      _
    // Predicated region
    $region10: #{tpu_custom_call.1} parent=1 // pred_check
      _
    $region11: #{tpu_custom_call.1} parent=1 // pred_check_branch
      %36 = sbr.rel (0) target = $region13
    $region12: #{tpu_custom_call.1} parent=1 // pred_region
      %37 = dma.done [#allocation3], 256
    $region13: #{tpu_custom_call.1} parent=1 // pred_fallthru
      _
    // Predicated region
    $region14: #{tpu_custom_call.1} parent=1 // pred_check
      _
    $region15: #{tpu_custom_call.1} parent=1 // pred_check_branch
      %39 = sbr.rel (0) target = $region17
    $region16: #{tpu_custom_call.1} parent=1 // pred_region
      %40 = dma.done [#allocation6], 16
    $region17: #{tpu_custom_call.1} parent=1 // pred_fallthru
      _
    %v41 = vld [vmem:[#allocation2] sm:$0xff]
    %v42 = vld [vmem:[#allocation2 + $0x8] sm:$0xff]
    %v43 = vld [vmem:[#allocation5] sm:$0x1]
    %v45 = vlaneseq
    %v46 = vshrl.u32 %v45, 7
    %v47 = vsub.s32 0, %v46
    %v48 = vrot.slane %v43, %v47
    %v50 = vmul.f32 %v41, %v48
    %v51 = vmul.f32 %v42, %v48
    %vm52 = vcmask 261120
    %v53 = vsel %vm52, %v50, 0.0
    %54 = vadd.xlane.f32.xlu0 %v53
    %v55 = vpop.xlane.xlu0 %54
    %v56 = vsel %vm52, %v51, 0.0
    %57 = vadd.xlane.f32.xlu0 %v56
    %v58 = vpop.xlane.xlu0 %57
    %v59 = vmul.f32 %v55, 0.5
    %v60 = vmul.f32 %v58, 0.5
    %v61 = vmul.f32 %v55, 0.044715
    %v62 = vmul.f32 %v58, 0.044715
    %v63 = vmul.f32 %v61, %v55
    %v64 = vmul.f32 %v62, %v58
    %v65 = vmul.f32 %v63, %v55
    %v66 = vmul.f32 %v64, %v58
    %v67 = vadd.f32 %v55, %v65
    %v68 = vadd.f32 %v58, %v66
    %v69 = vmul.f32 %v67, 0.7978846
    %v70 = vmul.f32 %v68, 0.7978846
    %v71 = vtanh.pop %v69
    %v72 = vtanh.pop %v70
    %v73 = vadd.f32 %v71, 1.0
    %v74 = vadd.f32 %v72, 1.0
    %v75 = vmul.f32 %v59, %v73
    %v76 = vmul.f32 %v60, %v74
    %v79 = vlaneseq
    %v80 = vand.u32 %v79, 127
    %v81 = vlaneseq
    %v82 = vshrl.u32 %v81, 7
    %v83 = vsub.s32 %v80, %v82
    %v84 = vrot.slane %v75, %v83
    %v85 = vlaneseq
    %v86 = vshrl.u32 %v85, 7
    %v87 = vsub.s32 %v80, %v86
    %v88 = vrot.slane %v76, %v87
    %vm89 = vcmask 1041409
    %v90 = vsel %vm89, %v88, %v84
    %vm92 = vcmask 58368
    %v93 = vsel %vm92, %v90, -inf
    %94 = vmax.xlane.f32.xlu0 %v93
    %v95 = vpop.xlane.xlu0 %94
    %v97 = vlaneseq
    %v98 = vshrl.u32 %v97, 7
    %v99 = vsub.s32 0, %v98
    %v100 = vrot.slane %v95, %v99
    %v101 = vlaneseq
    %v102 = vshrl.u32 %v101, 7
    %v103 = vsub.s32 1, %v102
    %v104 = vrot.slane %v95, %v103
    %v107 = vsub.f32 %v75, %v100
    %v108 = vsub.f32 %v76, %v104
    %v109 = vmul.f32 %v107, 1.442695
    %v110 = vpow.pop %v109
    %v111 = vmul.f32 %v108, 1.442695
    %v112 = vpow.pop %v111
    %115 = vset.pattern.permute.xlu0 0
    %116 = vperm.xlu0 %115, %v110
    %v117 = vpop.permute.xlu0 %116
    %118 = vset.pattern.permute.xlu0 0
    %119 = vperm.xlu0 %118, %v112
    %v120 = vpop.permute.xlu0 %119
    %v121 = vlaneseq
    %v122 = vshrl.u32 %v121, 7
    %v123 = vsub.s32 %v80, %v122
    %v124 = vrot.slane %v117, %v123
    %v125 = vlaneseq
    %v126 = vshrl.u32 %v125, 7
    %v127 = vsub.s32 %v80, %v126
    %v128 = vrot.slane %v120, %v127
    %v129 = vsel %vm89, %v128, %v124
    %v131 = vsel %vm92, %v129, 0.0
    %132 = vadd.xlane.f32.xlu0 %v131
    %v133 = vpop.xlane.xlu0 %132
    %v135 = vlaneseq
    %v136 = vshrl.u32 %v135, 7
    %v137 = vsub.s32 0, %v136
    %v138 = vrot.slane %v133, %v137
    %v139 = vlaneseq
    %v140 = vshrl.u32 %v139, 7
    %v141 = vsub.s32 1, %v140
    %v142 = vrot.slane %v133, %v141
    %v145 = vrcp.pop %v138
    %v146 = vmul.f32 %v110, %v145
    %v147 = vrcp.pop %v142
    %v148 = vmul.f32 %v112, %v147
    %150 = vset.pattern.permute.xlu0 0
    %151 = vperm.xlu0 %150, %v146
    %v152 = vpop.permute.xlu0 %151
    %155 = vset.pattern.permute.xlu0 0
    %156 = vperm.xlu0 %155, %v148
    %v157 = vpop.permute.xlu0 %156
    %v159 = vmul.f32 %v152, %v41
    %v160 = vmul.f32 %v157, %v42
    %v161 = vsel %vm52, %v159, 0.0
    %v162 = vrot.slane %v161, 4
    %v163 = vadd.f32 %v161, %v162
    %v164 = vrot.slane %v163, 2
    %v165 = vadd.f32 %v163, %v164
    %v166 = vrot.slane %v165, 1
    %v167 = vadd.f32 %v165, %v166
    %v168 = vsel %vm52, %v160, 0.0
    %v169 = vrot.slane %v168, 4
    %v170 = vadd.f32 %v168, %v169
    %v171 = vrot.slane %v170, 2
    %v172 = vadd.f32 %v170, %v171
    %v173 = vrot.slane %v172, 1
    %v174 = vadd.f32 %v172, %v173
    %v177 = vsel %vm89, %v174, %v167
    %vm179 = vcmask 254976
    %180 = vst.msk [vmem:[#allocation7] sm:$0x3] %vm179, %v177
    %v181 = vlaneseq
    %v182 = vshrl.u32 %v181, 7
    %v183 = vsub.s32 %v80, %v182
    %v184 = vrot.slane %v152, %v183
    %v185 = vlaneseq
    %v186 = vshrl.u32 %v185, 7
    %v187 = vsub.s32 %v80, %v186
    %v188 = vrot.slane %v157, %v187
    %v189 = vsel %vm89, %v188, %v184
    %191 = vst.msk [vmem:[#allocation8] sm:$0x3] %vm92, %v189
    // Predicated region
    $region18: #{tpu_custom_call.1} parent=1 // pred_check
      _
    $region19: #{tpu_custom_call.1} parent=1 // pred_check_branch
      %193 = sbr.rel (0) target = $region21
    $region20: #{tpu_custom_call.1} parent=1 // pred_region
      %s195 = ssub.s32 32, 32
      %196 = vsyncadd [#allocation4], %s195
      %s198 = sshll.u32 [#allocation7], 4
      %s199 = int_to_ptr.vmem [resolvable:$true] %s198
      %201 = dma.vmem_to_hbm [thread:$0]  %s199, 32, %s2, [#allocation4]
    $region21: #{tpu_custom_call.1} parent=1 // pred_fallthru
      _
    // Predicated region
    $region22: #{tpu_custom_call.1} parent=1 // pred_check
      _
    $region23: #{tpu_custom_call.1} parent=1 // pred_check_branch
      %203 = sbr.rel (0) target = $region25
    $region24: #{tpu_custom_call.1} parent=1 // pred_region
      %s205 = ssub.s32 32, 32
      %206 = vsyncadd [#allocation9], %s205
      %s208 = sshll.u32 [#allocation8], 4
      %s209 = int_to_ptr.vmem [resolvable:$true] %s208
      %211 = dma.vmem_to_hbm [thread:$0]  %s209, 32, %s3, [#allocation9]
    $region25: #{tpu_custom_call.1} parent=1 // pred_fallthru
      _
    // Predicated region
    $region26: #{tpu_custom_call.1} parent=1 // pred_check
      _
    $region27: #{tpu_custom_call.1} parent=1 // pred_check_branch
      %213 = sbr.rel (0) target = $region29
    $region28: #{tpu_custom_call.1} parent=1 // pred_region
      %214 = dma.done [#allocation4], 32
    $region29: #{tpu_custom_call.1} parent=1 // pred_fallthru
      _
    // Predicated region
    $region30: #{tpu_custom_call.1} parent=1 // pred_check
      _
    $region31: #{tpu_custom_call.1} parent=1 // pred_check_branch
      %216 = sbr.rel (0) target = $region33
    $region32: #{tpu_custom_call.1} parent=1 // pred_region
      %217 = dma.done [#allocation9], 32
    $region33: #{tpu_custom_call.1} parent=1 // pred_fallthru
      _
    %218 = vsyncpa [#allocation3], 1
    %219 = vsyncpa [#allocation6], 1
    %220 = vsyncpa [#allocation4], 1
    %221 = vsyncpa [#allocation9], 1

</llo_original>
